<compile_context>
chip_gen: v7x
topology: tpu7x:2x2x1
jax: 0.10.0
libtpu: 0.0.40
codegen_flags: <defaults>
</compile_context>

<pallas_src>
import functools
import itertools

import numpy as np
import jax
import jax.numpy as jnp
from jax.experimental import pallas as pl
from jax.experimental.pallas import tpu as pltpu


_TGT_BLK = 128  # target (lane) block width of the output cost matrix


def _rup(x, m):
    return ((x + m - 1) // m) * m


def _cost_kernel(cc_ref, out_bez_ref, bern_ref, tgt_blk_ref, ones_ref,
                 c_ref, out_s_ref, *, m_per_block, init_pad):
    """One grid step: one query tile vs. one 128-wide target block.

    cc_ref      : (n_tile, 1)        class_weight * focal class cost (precomputed)
    out_bez_ref : (n_tile, 8)        flattened predicted control points
    bern_ref    : (8, K_pad)         expanded cubic Bernstein basis
    tgt_blk_ref : (128, K_pad)       precomputed target sample points (this block)
    ones_ref    : (K_pad, 1)         coord_weight on valid sample lanes, 0 on padding
    c_ref       : (n_tile, 128)      lane-dense output block
    out_s_ref   : (n_tile, K_pad)    VMEM scratch for the sampled query tile
    """
    # Bezier sampling of the query tile: (n_tile, 8) @ (8, K_pad) on the MXU,
    # stored to VMEM scratch so the target loop streams it via vld instead of
    # pinning 32+ vregs.
    out_s_ref[...] = jnp.dot(out_bez_ref[...], bern_ref[...],
                             preferred_element_type=jnp.float32)

    if init_pad:
        # Only the single-block (M < 128) case leaves trailing columns unwritten;
        # give them a defined value (the wrapper slices them off anyway).
        c_ref[...] = jnp.zeros_like(c_ref)

    cc = cc_ref[...]          # (n_tile, 1)
    ones_w = ones_ref[...]    # (K_pad, 1), coord_weight already folded in

    # Statically-unrolled loop over this block's targets.  Per target:
    #   VPU  : abs-diff over (n_tile, K_pad)
    #   MXU  : lane reduction via the ones-vector matmul (off the XLU)
    #   vst  : one (n_tile, 1) column store straight into the VMEM output block
    for m in range(m_per_block):
        tgt_row = tgt_blk_ref[pl.ds(m, 1), :]                    # (1, K_pad)
        diff = jnp.abs(out_s_ref[...] - tgt_row)                 # (n_tile, K_pad)
        coord = jnp.dot(diff, ones_w,
                        preferred_element_type=jnp.float32)      # (n_tile, 1)
        c_ref[:, pl.ds(m, 1)] = cc + coord


@functools.partial(jax.jit,
                   static_argnames=('class_weight', 'coord_weight',
                                    'num_sample_points', 'alpha', 'gamma'))
def bezier_matcher_cost(pred_logits, pred_beziers, tgt_beziers, *,
                        class_weight=1.0, coord_weight=1.0,
                        num_sample_points=100, alpha=0.25, gamma=2.0):
    """Returns C of shape (bs, num_queries, num_total_targets), float32."""
    bs, nq, nc = pred_logits.shape
    N = bs * nq
    M = int(tgt_beziers.shape[0])
    S = int(num_sample_points)
    K = 2 * S
    K_pad = _rup(K, 128)

    if M == 0:
        return jnp.zeros((bs, nq, 0), jnp.float32)

    # Query tile: <=128 rows, sized so the grid has >=2 steps when N allows it
    # (v7x megacore); rows must stay a multiple of 8 (sublane constraint).
    n_tile = min(128, _rup(max(1, (N + 1) // 2), 8))
    N_pad = _rup(N, n_tile)
    M_out = _rup(M, _TGT_BLK)            # lane-dense output last dim
    n_tgt_blocks = M_out // _TGT_BLK
    m_per_block = M if n_tgt_blocks == 1 else _TGT_BLK

    # Cubic Bernstein basis B (S, 4), expanded so that
    #   samples_flat[n, s*2+d] = sum_c bez_flat[n, c*2+d] * BE[c*2+d, s*2+d]
    t = jnp.linspace(0.0, 1.0, S, dtype=jnp.float32)
    B = jnp.stack([(1 - t) ** 3,
                   3 * (1 - t) ** 2 * t,
                   3 * (1 - t) * t ** 2,
                   t ** 3], axis=-1)                                     # (S, 4)
    BE = jnp.einsum('sc,de->cdse', B, jnp.eye(2, dtype=jnp.float32)).reshape(8, K)
    BE = jnp.pad(BE, ((0, 0), (0, K_pad - K)))                           # (8, K_pad)

    # Focal class cost at class index 0 (the reference hard-codes [:, 0]); computed
    # at full lane density in the wrapper; class_weight already applied.
    p = jax.nn.sigmoid(pred_logits.reshape(N, nc)[:, 0].astype(jnp.float32))
    pos = alpha * (1.0 - p) ** gamma * (-jnp.log(p + 1e-8))
    neg = (1.0 - alpha) * p ** gamma * (-jnp.log(1.0 - p + 1e-8))
    cc = (class_weight * (pos - neg)).reshape(N, 1)
    cc = jnp.pad(cc, ((0, N_pad - N), (0, 0)))                           # (N_pad, 1)

    out_bez = pred_beziers.reshape(N, 8).astype(jnp.float32)
    out_bez = jnp.pad(out_bez, ((0, N_pad - N), (0, 0)))                 # (N_pad, 8)

    # Target sample points are tiny; precompute once instead of resampling per tile.
    tgt_s = jnp.dot(tgt_beziers.reshape(M, 8).astype(jnp.float32), BE)   # (M, K_pad)
    tgt_s = jnp.pad(tgt_s, ((0, M_out - M), (0, 0)))                     # (M_out, K_pad)

    # MXU reduction vector: coord_weight on the K valid sample lanes, 0 on padding.
    ones_w = jnp.where(jnp.arange(K_pad) < K,
                       jnp.float32(coord_weight), jnp.float32(0.0)).reshape(K_pad, 1)

    kernel = functools.partial(_cost_kernel,
                               m_per_block=m_per_block,
                               init_pad=(m_per_block < _TGT_BLK))

    c = pl.pallas_call(
        kernel,
        out_shape=jax.ShapeDtypeStruct((N_pad, M_out), jnp.float32),
        grid=(N_pad // n_tile, n_tgt_blocks),
        in_specs=[
            pl.BlockSpec((n_tile, 1), lambda i, j: (i, 0)),          # class cost
            pl.BlockSpec((n_tile, 8), lambda i, j: (i, 0)),          # control points
            pl.BlockSpec((8, K_pad), lambda i, j: (0, 0)),           # Bernstein basis
            pl.BlockSpec((_TGT_BLK, K_pad), lambda i, j: (j, 0)),    # target samples
            pl.BlockSpec((K_pad, 1), lambda i, j: (0, 0)),           # weighted ones
        ],
        out_specs=pl.BlockSpec((n_tile, _TGT_BLK), lambda i, j: (i, j)),
        scratch_shapes=[pltpu.VMEM((n_tile, K_pad), jnp.float32)],
        compiler_params=pltpu.CompilerParams(
            dimension_semantics=("parallel", "parallel")),
    )(cc, out_bez, BE, tgt_s, ones_w)

    return c[:N, :M].reshape(bs, nq, M)


def _brute_lsa(cost):
    """scipy-free fallback for tiny problems; handles both orientations."""
    nr, ncol = cost.shape
    if nr < ncol:
        col_ind, row_ind = _brute_lsa(cost.T)
        order = np.argsort(row_ind)
        return row_ind[order], col_ind[order]
    best_sum, best_rows = None, None
    for rows in itertools.permutations(range(nr), ncol):
        s = sum(cost[r, c] for c, r in enumerate(rows))
        if best_sum is None or s < best_sum:
            best_sum, best_rows = s, rows
    pairs = sorted(zip(best_rows, range(ncol)))
    row_ind = np.array([p[0] for p in pairs], dtype=np.int64)
    col_ind = np.array([p[1] for p in pairs], dtype=np.int64)
    return row_ind, col_ind


def _linear_sum_assignment(cost):
    try:
        from scipy.optimize import linear_sum_assignment as lsa
        return lsa(cost)
    except Exception:
        return _brute_lsa(cost)


def bezier_hungarian_match(outputs, targets, *,
                           class_weight=1.0, coord_weight=1.0,
                           num_sample_points=100, focal_alpha=0.25, focal_gamma=2.0):
    sizes = [int(v['beziers'].shape[0]) for v in targets]
    if sum(sizes) == 0:
        tgt_beziers = jnp.zeros((0, 4, 2), jnp.float32)
    else:
        tgt_beziers = jnp.concatenate([v['beziers'] for v in targets], axis=0)

    C = bezier_matcher_cost(outputs['pred_logits'], outputs['pred_beziers'], tgt_beziers,
                            class_weight=class_weight, coord_weight=coord_weight,
                            num_sample_points=num_sample_points,
                            alpha=focal_alpha, gamma=focal_gamma)
    C = np.asarray(jax.block_until_ready(C))

    # Host-side Hungarian assignment per image, exactly as the reference does.
    offsets = np.cumsum([0] + sizes)
    indices = []
    for i in range(len(sizes)):
        c_i = C[i, :, offsets[i]:offsets[i + 1]]
        row, col = _linear_sum_assignment(c_i)
        indices.append((np.asarray(row, dtype=np.int64), np.asarray(col, dtype=np.int64)))
    return indices, C


def _reference_cost(pred_logits, pred_beziers, tgt_beziers,
                    class_weight, coord_weight, S, alpha, gamma):
    bs, nq, nc = pred_logits.shape
    N = bs * nq
    p = jax.nn.sigmoid(pred_logits.reshape(N, nc).astype(jnp.float32))
    neg = (1 - alpha) * p ** gamma * (-jnp.log(1 - p + 1e-8))
    pos = alpha * (1 - p) ** gamma * (-jnp.log(p + 1e-8))
    cost_class = pos[:, 0] - neg[:, 0]
    t = jnp.linspace(0.0, 1.0, S, dtype=jnp.float32)
    B = jnp.stack([(1 - t) ** 3, 3 * (1 - t) ** 2 * t, 3 * (1 - t) * t ** 2, t ** 3], -1)
    out_s = jnp.einsum('sc,ncd->nsd', B, pred_beziers.reshape(N, 4, 2)).reshape(N, 2 * S)
    tgt_s = jnp.einsum('sc,mcd->msd', B, tgt_beziers.reshape(-1, 4, 2)).reshape(-1, 2 * S)
    cost_coord = jnp.sum(jnp.abs(out_s[:, None, :] - tgt_s[None, :, :]), -1)
    return (class_weight * cost_class[:, None] + coord_weight * cost_coord).reshape(bs, nq, -1)


if __name__ == "__main__":
    key = jax.random.PRNGKey(0)
    bs, nq, nc = 2, 8, 1
    num_sample_points = 100
    k1, k2, k3 = jax.random.split(key, 3)

    outputs = {
        'pred_logits': jax.random.normal(k1, (bs, nq, nc), dtype=jnp.float32),
        'pred_beziers': jax.random.normal(k2, (bs, nq, 8), dtype=jnp.float32),
    }
    sizes = [2, 3]
    targets = []
    tk = k3
    for sz in sizes:
        tk, ka = jax.random.split(tk, 2)
        targets.append({
            'labels': jnp.zeros((sz,), dtype=jnp.int32),
            'beziers': jax.random.normal(ka, (sz, 4, 2), dtype=jnp.float32),
        })

    indices, C_pallas = bezier_hungarian_match(outputs, targets,
                                               num_sample_points=num_sample_points)

    # Correctness check of the Pallas-computed cost matrix vs a pure-JAX reference.
    # Tolerance 1e-3: the in-kernel MXU reduce accumulates in a different association
    # order than the reference einsum/sum over 200 f32 terms.
    tgt_beziers = jnp.concatenate([v['beziers'] for v in targets], axis=0)
    C_ref = np.asarray(_reference_cost(outputs['pred_logits'], outputs['pred_beziers'],
                                       tgt_beziers, 1.0, 1.0,
                                       num_sample_points, 0.25, 2.0))
    np.testing.assert_allclose(C_pallas, C_ref, rtol=1e-3, atol=1e-3)

    # basic sanity on the assignment output structure
    for (row, col), sz in zip(indices, sizes):
        assert row.dtype == np.int64 and col.dtype == np.int64
        assert len(row) == len(col) == min(nq, sz)

    print("KERNEL_OK")
</pallas_src>

<mosaic_0001>
module attributes {stable_mosaic.version = 11 : i64} {
  func.func @_cost_kernel(%arg0: i32, %arg1: i32, %arg2: memref<8x1xf32, #tpu.memory_space<vmem>>, %arg3: memref<8x8xf32, #tpu.memory_space<vmem>>, %arg4: memref<8x256xf32, #tpu.memory_space<vmem>>, %arg5: memref<128x256xf32, #tpu.memory_space<vmem>>, %arg6: memref<256x1xf32, #tpu.memory_space<vmem>>, %arg7: memref<8x128xf32, #tpu.memory_space<vmem>>, %arg8: memref<8x256xf32, #tpu.memory_space<vmem>>) attributes {dimension_semantics = [#tpu.dimension_semantics<parallel>, #tpu.dimension_semantics<parallel>], iteration_bounds = array<i64: 2, 1>, scalar_prefetch = 0 : i64, scratch_operands = 1 : i64, tpu.core_type = #tpu.core_type<tc>, window_params = [{transform_indices = @transform_0, window_bounds = array<i64: 8, 1>}, {transform_indices = @transform_1, window_bounds = array<i64: 8, 8>}, {pipeline_mode = #tpu.pipeline_mode<synchronous>, transform_indices = @transform_2, window_bounds = array<i64: 8, 256>}, {transform_indices = @transform_3, window_bounds = array<i64: 128, 256>}, {pipeline_mode = #tpu.pipeline_mode<synchronous>, transform_indices = @transform_4, window_bounds = array<i64: 256, 1>}, {transform_indices = @transform_5, window_bounds = array<i64: 8, 128>}]} {
    %c0 = arith.constant 0 : index
    %c0_0 = arith.constant 0 : index
    %0 = vector.load %arg3[%c0, %c0_0] : memref<8x8xf32, #tpu.memory_space<vmem>>, vector<8x8xf32>
    %c0_1 = arith.constant 0 : index
    %c0_2 = arith.constant 0 : index
    %1 = vector.load %arg4[%c0_1, %c0_2] : memref<8x256xf32, #tpu.memory_space<vmem>>, vector<8x256xf32>
    %cst = arith.constant dense<0.000000e+00> : vector<8x256xf32>
    %2 = tpu.matmul %0, %1, %cst {dimension_numbers = #tpu.dot_dimension_numbers<[1], [0], [0], [1], [0, 0, 1, 1], [], []>} : vector<8x8xf32>, vector<8x256xf32>, vector<8x256xf32> -> vector<8x256xf32>
    %c0_3 = arith.constant 0 : index
    %c0_4 = arith.constant 0 : index
    %3 = vector.load %arg8[%c0_3, %c0_4] : memref<8x256xf32, #tpu.memory_space<vmem>>, vector<8x256xf32>
    tpu.vector_store %arg8[%c0_3, %c0_4], %2 {strides = array<i32>} : memref<8x256xf32, #tpu.memory_space<vmem>>, vector<8x256xf32>,
    %cst_5 = arith.constant 0.000000e+00 : f32
    %4 = vector.broadcast %cst_5 : f32 to vector<8x128xf32>
    %c0_6 = arith.constant 0 : index
    %c0_7 = arith.constant 0 : index
    %5 = vector.load %arg7[%c0_6, %c0_7] : memref<8x128xf32, #tpu.memory_space<vmem>>, vector<8x128xf32>
    tpu.vector_store %arg7[%c0_6, %c0_7], %4 {strides = array<i32>} : memref<8x128xf32, #tpu.memory_space<vmem>>, vector<8x128xf32>,
    %c0_8 = arith.constant 0 : index
    %c0_9 = arith.constant 0 : index
    %6 = vector.load %arg2[%c0_8, %c0_9] : memref<8x1xf32, #tpu.memory_space<vmem>>, vector<8x1xf32>
    %c0_10 = arith.constant 0 : index
    %c0_11 = arith.constant 0 : index
    %7 = vector.load %arg6[%c0_10, %c0_11] : memref<256x1xf32, #tpu.memory_space<vmem>>, vector<256x1xf32>
    %c0_12 = arith.constant 0 : index
    %c0_13 = arith.constant 0 : index
    %8 = vector.load %arg5[%c0_12, %c0_13] : memref<128x256xf32, #tpu.memory_space<vmem>>, vector<1x256xf32>
    %c0_14 = arith.constant 0 : index
    %c0_15 = arith.constant 0 : index
    %9 = vector.load %arg8[%c0_14, %c0_15] : memref<8x256xf32, #tpu.memory_space<vmem>>, vector<8x256xf32>
    %10 = vector.broadcast %8 : vector<1x256xf32> to vector<8x256xf32>
    %11 = arith.subf %9, %10 : vector<8x256xf32>
    %12 = math.absf %11 : vector<8x256xf32>
    %cst_16 = arith.constant dense<0.000000e+00> : vector<8x1xf32>
    %13 = tpu.matmul %12, %7, %cst_16 {dimension_numbers = #tpu.dot_dimension_numbers<[1], [0], [0], [1], [0, 0, 1, 1], [], []>} : vector<8x256xf32>, vector<256x1xf32>, vector<8x1xf32> -> vector<8x1xf32>
    %14 = arith.addf %6, %13 : vector<8x1xf32>
    %c0_17 = arith.constant 0 : index
    %c0_18 = arith.constant 0 : index
    %15 = vector.load %arg7[%c0_17, %c0_18] : memref<8x128xf32, #tpu.memory_space<vmem>>, vector<8x1xf32>
    tpu.vector_store %arg7[%c0_17, %c0_18], %14 {strides = array<i32>} : memref<8x128xf32, #tpu.memory_space<vmem>>, vector<8x1xf32>,
    %c1 = arith.constant 1 : index
    %c0_19 = arith.constant 0 : index
    %16 = vector.load %arg5[%c1, %c0_19] : memref<128x256xf32, #tpu.memory_space<vmem>>, vector<1x256xf32>
    %c0_20 = arith.constant 0 : index
    %c0_21 = arith.constant 0 : index
    %17 = vector.load %arg8[%c0_20, %c0_21] : memref<8x256xf32, #tpu.memory_space<vmem>>, vector<8x256xf32>
    %18 = vector.broadcast %16 : vector<1x256xf32> to vector<8x256xf32>
    %19 = arith.subf %17, %18 : vector<8x256xf32>
    %20 = math.absf %19 : vector<8x256xf32>
    %cst_22 = arith.constant dense<0.000000e+00> : vector<8x1xf32>
    %21 = tpu.matmul %20, %7, %cst_22 {dimension_numbers = #tpu.dot_dimension_numbers<[1], [0], [0], [1], [0, 0, 1, 1], [], []>} : vector<8x256xf32>, vector<256x1xf32>, vector<8x1xf32> -> vector<8x1xf32>
    %22 = arith.addf %6, %21 : vector<8x1xf32>
    %c0_23 = arith.constant 0 : index
    %c1_24 = arith.constant 1 : index
    %23 = vector.load %arg7[%c0_23, %c1_24] : memref<8x128xf32, #tpu.memory_space<vmem>>, vector<8x1xf32>
    tpu.vector_store %arg7[%c0_23, %c1_24], %22 {strides = array<i32>} : memref<8x128xf32, #tpu.memory_space<vmem>>, vector<8x1xf32>,
    %c2 = arith.constant 2 : index
    %c0_25 = arith.constant 0 : index
    %24 = vector.load %arg5[%c2, %c0_25] : memref<128x256xf32, #tpu.memory_space<vmem>>, vector<1x256xf32>
    %c0_26 = arith.constant 0 : index
    %c0_27 = arith.constant 0 : index
    %25 = vector.load %arg8[%c0_26, %c0_27] : memref<8x256xf32, #tpu.memory_space<vmem>>, vector<8x256xf32>
    %26 = vector.broadcast %24 : vector<1x256xf32> to vector<8x256xf32>
    %27 = arith.subf %25, %26 : vector<8x256xf32>
    %28 = math.absf %27 : vector<8x256xf32>
    %cst_28 = arith.constant dense<0.000000e+00> : vector<8x1xf32>
    %29 = tpu.matmul %28, %7, %cst_28 {dimension_numbers = #tpu.dot_dimension_numbers<[1], [0], [0], [1], [0, 0, 1, 1], [], []>} : vector<8x256xf32>, vector<256x1xf32>, vector<8x1xf32> -> vector<8x1xf32>
    %30 = arith.addf %6, %29 : vector<8x1xf32>
    %c0_29 = arith.constant 0 : index
    %c2_30 = arith.constant 2 : index
    %31 = vector.load %arg7[%c0_29, %c2_30] : memref<8x128xf32, #tpu.memory_space<vmem>>, vector<8x1xf32>
    tpu.vector_store %arg7[%c0_29, %c2_30], %30 {strides = array<i32>} : memref<8x128xf32, #tpu.memory_space<vmem>>, vector<8x1xf32>,
    %c3 = arith.constant 3 : index
    %c0_31 = arith.constant 0 : index
    %32 = vector.load %arg5[%c3, %c0_31] : memref<128x256xf32, #tpu.memory_space<vmem>>, vector<1x256xf32>
    %c0_32 = arith.constant 0 : index
    %c0_33 = arith.constant 0 : index
    %33 = vector.load %arg8[%c0_32, %c0_33] : memref<8x256xf32, #tpu.memory_space<vmem>>, vector<8x256xf32>
    %34 = vector.broadcast %32 : vector<1x256xf32> to vector<8x256xf32>
    %35 = arith.subf %33, %34 : vector<8x256xf32>
    %36 = math.absf %35 : vector<8x256xf32>
    %cst_34 = arith.constant dense<0.000000e+00> : vector<8x1xf32>
    %37 = tpu.matmul %36, %7, %cst_34 {dimension_numbers = #tpu.dot_dimension_numbers<[1], [0], [0], [1], [0, 0, 1, 1], [], []>} : vector<8x256xf32>, vector<256x1xf32>, vector<8x1xf32> -> vector<8x1xf32>
    %38 = arith.addf %6, %37 : vector<8x1xf32>
    %c0_35 = arith.constant 0 : index
    %c3_36 = arith.constant 3 : index
    %39 = vector.load %arg7[%c0_35, %c3_36] : memref<8x128xf32, #tpu.memory_space<vmem>>, vector<8x1xf32>
    tpu.vector_store %arg7[%c0_35, %c3_36], %38 {strides = array<i32>} : memref<8x128xf32, #tpu.memory_space<vmem>>, vector<8x1xf32>,
    %c4 = arith.constant 4 : index
    %c0_37 = arith.constant 0 : index
    %40 = vector.load %arg5[%c4, %c0_37] : memref<128x256xf32, #tpu.memory_space<vmem>>, vector<1x256xf32>
    %c0_38 = arith.constant 0 : index
    %c0_39 = arith.constant 0 : index
    %41 = vector.load %arg8[%c0_38, %c0_39] : memref<8x256xf32, #tpu.memory_space<vmem>>, vector<8x256xf32>
    %42 = vector.broadcast %40 : vector<1x256xf32> to vector<8x256xf32>
    %43 = arith.subf %41, %42 : vector<8x256xf32>
    %44 = math.absf %43 : vector<8x256xf32>
    %cst_40 = arith.constant dense<0.000000e+00> : vector<8x1xf32>
    %45 = tpu.matmul %44, %7, %cst_40 {dimension_numbers = #tpu.dot_dimension_numbers<[1], [0], [0], [1], [0, 0, 1, 1], [], []>} : vector<8x256xf32>, vector<256x1xf32>, vector<8x1xf32> -> vector<8x1xf32>
    %46 = arith.addf %6, %45 : vector<8x1xf32>
    %c0_41 = arith.constant 0 : index
    %c4_42 = arith.constant 4 : index
    %47 = vector.load %arg7[%c0_41, %c4_42] : memref<8x128xf32, #tpu.memory_space<vmem>>, vector<8x1xf32>
    tpu.vector_store %arg7[%c0_41, %c4_42], %46 {strides = array<i32>} : memref<8x128xf32, #tpu.memory_space<vmem>>, vector<8x1xf32>,
    return
  }
  func.func @transform_0(%arg0: i32, %arg1: i32) -> (i32, i32) {
    %c0_i32 = arith.constant 0 : i32
    %c0_i32_0 = arith.constant 0 : i32
    return %arg0, %c0_i32 : i32, i32
  }
  func.func @transform_1(%arg0: i32, %arg1: i32) -> (i32, i32) {
    %c0_i32 = arith.constant 0 : i32
    %c0_i32_0 = arith.constant 0 : i32
    return %arg0, %c0_i32 : i32, i32
  }
  func.func @transform_2(%arg0: i32, %arg1: i32) -> (i32, i32) {
    %c0_i32 = arith.constant 0 : i32
    %c0_i32_0 = arith.constant 0 : i32
    %c0_i32_1 = arith.constant 0 : i32
    return %c0_i32, %c0_i32_0 : i32, i32
  }
  func.func @transform_3(%arg0: i32, %arg1: i32) -> (i32, i32) {
    %c0_i32 = arith.constant 0 : i32
    %c0_i32_0 = arith.constant 0 : i32
    return %arg1, %c0_i32 : i32, i32
  }
  func.func @transform_4(%arg0: i32, %arg1: i32) -> (i32, i32) {
    %c0_i32 = arith.constant 0 : i32
    %c0_i32_0 = arith.constant 0 : i32
    %c0_i32_1 = arith.constant 0 : i32
    return %c0_i32, %c0_i32_0 : i32, i32
  }
  func.func @transform_5(%arg0: i32, %arg1: i32) -> (i32, i32) {
    %c0_i32 = arith.constant 0 : i32
    return %arg0, %arg1 : i32, i32
  }
}

</mosaic_0001>

<llo_original>
// kernel: bezier_matcher_cost.1
$region0: #{bezier_matcher_cost.1}
  #allocation0 [shape = 'u32[]', space=smem, size = 0x4, offset = 0x4, fixed_abs, tag = 'smem constant byte address 0x4 - core index']
  #allocation1 [shape = 'u32[144,128]{1,0:T(1,128)}', space=vmem, size = 0x12000, scoped, tag = 'internal scratch']
  #allocation2 [shape = 'f32[8,256]{1,0:T(8,128)}', space=vmem, size = 0x2000, scoped, tag = 'scratch operand']
  %s0 = inlined_call_operand.vmem [shape: f32[16,1], index: 0, kind: input, shape index: {}]
  %s1 = inlined_call_operand.vmem [shape: f32[16,8], index: 1, kind: input, shape index: {}]
  %s2 = inlined_call_operand.vmem [shape: f32[8,256], index: 2, kind: input, shape index: {}]
  %s3 = inlined_call_operand.vmem [shape: f32[128,256], index: 3, kind: input, shape index: {}]
  %s4 = inlined_call_operand.vmem [shape: f32[256,1], index: 4, kind: input, shape index: {}]
  %s5 = inlined_call_operand.vmem [shape: f32[16,128], index: 5, kind: output, shape index: {}]
  %s6 = sld [smem:[#allocation0]]
  $region53: #{bezier_matcher_cost.1} parent=0
    _
  %s8 = ssub.s32 1, %s6
  %s9 = scalar_select 0, %s8, %s6
  loop: start=0, step=1, limit=4
  $region2: #{bezier_matcher_cost.1} parent=0 // loop_pre_header
    _
  $region3: #{bezier_matcher_cost.1} parent=0 // loop_header
    %s11 = sphi 0, %s15
    %p12 = scmp.ge.s32.totalorder %s11, 4
    %s18 = sphi 0, %s30
    %s19 = sphi 0, %s26
    %s20 = sphi 0, %s18
    %s21 = sphi 0, %s19
    %s22 = sphi 0, %s20
    %s23 = sphi 0, %s21
    %s33 = sphi 0, %s35
    %s36 = sphi 0, %s33
    %s37 = sphi 0, %s36
    %s53 = sphi 0, %s37
    %s59 = sphi 0, %s61
    %s62 = sphi 0, %s59
    %s63 = sphi 0, %s62
    %s79 = sphi 0, %s63
    %s83 = sphi 0, %s83
    %s85 = sphi 0, %s83
    %s86 = sphi 0, %s85
    %s100 = sphi 0, %s86
    %s106 = sphi 0, %s108
    %s109 = sphi 0, %s106
    %s110 = sphi 0, %s109
    %s126 = sphi 0, %s110
    %s130 = sphi 0, %s130
    %s132 = sphi 0, %s130
    %s133 = sphi 0, %s132
    %s147 = sphi 0, %s133
    %s155 = sphi 0, %s157
    %s158 = sphi 0, %s155
    %s159 = sphi 0, %s158
    %s175 = sphi 0, %s159
  $region4: #{bezier_matcher_cost.1} parent=0 // loop_header_branch
    %14 = sbr.rel (%p12) target = $region8
  $region5: #{bezier_matcher_cost.1} parent=0 // loop_body
    %s16 = ssub.s32 %s11, 1
    %s17 = ssub.s32 %s11, 2
    %s24 = sadd.s32 1, %s19
    %p25 = scmp.ge.s32.totalorder %s24, 1
    %s26 = scalar_select %p25, 0, %s24
    %s27 = sadd.s32 1, %s18
    %s28 = scalar_select %p25, %s27, %s18
    %p29 = scmp.ge.s32.totalorder %s28, 2
    %s30 = scalar_select %p29, 0, %s28
    %s31 = ssub.s32 %s18, %s30
    %p32 = scmp.eq.s32.totalorder %s31, 0
    %s34 = sadd.s32 %s33, 1
    %s35 = scalar_select %p32, %s33, %s34
    %p38 = pneg %p32
    %p39 = scmp.eq.s32.totalorder %s11, 1
    %p40 = por %p38, %p39
    %p41 = scmp.ne.s32.totalorder %s33, %s36
    %p42 = scmp.eq.s32.totalorder %s11, 0
    %p43 = por %p41, %p42
    %p44 = scmp.ne.s32.totalorder %s33, %s36
    %p45 = scmp.eq.s32.totalorder %s16, 1
    %p46 = por %p44, %p45
    %p47 = scmp.ne.s32.totalorder %s36, %s37
    %p48 = scmp.eq.s32.totalorder %s16, 0
    %p49 = por %p47, %p48
    %p50 = scmp.ne.s32.totalorder %s36, %s37
    %p51 = scmp.eq.s32.totalorder %s17, 1
    %p52 = por %p50, %p51
    %p54 = scmp.ne.s32.totalorder %s37, %s53
    %p55 = scmp.eq.s32.totalorder %s17, 0
    %p56 = por %p54, %p55
    %s57 = ssub.s32 %s18, %s30
    %p58 = scmp.eq.s32.totalorder %s57, 0
    %s60 = sadd.s32 %s59, 1
    %s61 = scalar_select %p58, %s59, %s60
    %p64 = pneg %p58
    %p65 = scmp.eq.s32.totalorder %s11, 1
    %p66 = por %p64, %p65
    %p67 = scmp.ne.s32.totalorder %s59, %s62
    %p68 = scmp.eq.s32.totalorder %s11, 0
    %p69 = por %p67, %p68
    %p70 = scmp.ne.s32.totalorder %s59, %s62
    %p71 = scmp.eq.s32.totalorder %s16, 1
    %p72 = por %p70, %p71
    %p73 = scmp.ne.s32.totalorder %s62, %s63
    %p74 = scmp.eq.s32.totalorder %s16, 0
    %p75 = por %p73, %p74
    %p76 = scmp.ne.s32.totalorder %s62, %s63
    %p77 = scmp.eq.s32.totalorder %s17, 1
    %p78 = por %p76, %p77
    %p80 = scmp.ne.s32.totalorder %s63, %s79
    %p81 = scmp.eq.s32.totalorder %s17, 0
    %p82 = por %p80, %p81
    %s84 = sadd.s32 %s83, 1
    %p87 = scmp.eq.s32.totalorder %s11, 1
    %p88 = scmp.ne.s32.totalorder %s83, %s85
    %p89 = scmp.eq.s32.totalorder %s11, 0
    %p90 = por %p88, %p89
    %p91 = scmp.ne.s32.totalorder %s83, %s85
    %p92 = scmp.eq.s32.totalorder %s16, 1
    %p93 = por %p91, %p92
    %p94 = scmp.ne.s32.totalorder %s85, %s86
    %p95 = scmp.eq.s32.totalorder %s16, 0
    %p96 = por %p94, %p95
    %p97 = scmp.ne.s32.totalorder %s85, %s86
    %p98 = scmp.eq.s32.totalorder %s17, 1
    %p99 = por %p97, %p98
    %p101 = scmp.ne.s32.totalorder %s86, %s100
    %p102 = scmp.eq.s32.totalorder %s17, 0
    %p103 = por %p101, %p102
    %s104 = ssub.s32 %s19, %s26
    %p105 = scmp.eq.s32.totalorder %s104, 0
    %s107 = sadd.s32 %s106, 1
    %s108 = scalar_select %p105, %s106, %s107
    %p111 = pneg %p105
    %p112 = scmp.eq.s32.totalorder %s11, 1
    %p113 = por %p111, %p112
    %p114 = scmp.ne.s32.totalorder %s106, %s109
    %p115 = scmp.eq.s32.totalorder %s11, 0
    %p116 = por %p114, %p115
    %p117 = scmp.ne.s32.totalorder %s106, %s109
    %p118 = scmp.eq.s32.totalorder %s16, 1
    %p119 = por %p117, %p118
    %p120 = scmp.ne.s32.totalorder %s109, %s110
    %p121 = scmp.eq.s32.totalorder %s16, 0
    %p122 = por %p120, %p121
    %p123 = scmp.ne.s32.totalorder %s109, %s110
    %p124 = scmp.eq.s32.totalorder %s17, 1
    %p125 = por %p123, %p124
    %p127 = scmp.ne.s32.totalorder %s110, %s126
    %p128 = scmp.eq.s32.totalorder %s17, 0
    %p129 = por %p127, %p128
    %s131 = sadd.s32 %s130, 1
    %p134 = scmp.eq.s32.totalorder %s11, 1
    %p135 = scmp.ne.s32.totalorder %s130, %s132
    %p136 = scmp.eq.s32.totalorder %s11, 0
    %p137 = por %p135, %p136
    %p138 = scmp.ne.s32.totalorder %s130, %s132
    %p139 = scmp.eq.s32.totalorder %s16, 1
    %p140 = por %p138, %p139
    %p141 = scmp.ne.s32.totalorder %s132, %s133
    %p142 = scmp.eq.s32.totalorder %s16, 0
    %p143 = por %p141, %p142
    %p144 = scmp.ne.s32.totalorder %s132, %s133
    %p145 = scmp.eq.s32.totalorder %s17, 1
    %p146 = por %p144, %p145
    %p148 = scmp.ne.s32.totalorder %s133, %s147
    %p149 = scmp.eq.s32.totalorder %s17, 0
    %p150 = por %p148, %p149
    %s151 = ssub.s32 %s18, %s30
    %s152 = ssub.s32 %s19, %s26
    %s153 = sor.u32 %s151, %s152
    %p154 = scmp.eq.s32.totalorder %s153, 0
    %s156 = sadd.s32 %s155, 1
    %s157 = scalar_select %p154, %s155, %s156
    %p160 = pneg %p154
    %p161 = scmp.eq.s32.totalorder %s11, 1
    %p162 = por %p160, %p161
    %p163 = scmp.ne.s32.totalorder %s155, %s158
    %p164 = scmp.eq.s32.totalorder %s11, 0
    %p165 = por %p163, %p164
    %p166 = scmp.ne.s32.totalorder %s155, %s158
    %p167 = scmp.eq.s32.totalorder %s16, 1
    %p168 = por %p166, %p167
    %p169 = scmp.ne.s32.totalorder %s158, %s159
    %p170 = scmp.eq.s32.totalorder %s16, 0
    %p171 = por %p169, %p170
    %p172 = scmp.ne.s32.totalorder %s158, %s159
    %p173 = scmp.eq.s32.totalorder %s17, 1
    %p174 = por %p172, %p173
    %p176 = scmp.ne.s32.totalorder %s159, %s175
    %p177 = scmp.eq.s32.totalorder %s17, 0
    %p178 = por %p176, %p177
    %p179 = scmp.le.s32.totalorder 1, %s11
    %p180 = scmp.lt.s32.totalorder %s11, 3
    %p181 = pnand %p179, %p180
    %p182 = pneg %p181
    // Predicated region
    $region9: #{bezier_matcher_cost.1} parent=5 // pred_check
      _
    $region10: #{bezier_matcher_cost.1} parent=5 // pred_check_branch
      %184 = sbr.rel (%p181) target = $region12
    $region11: #{bezier_matcher_cost.1} parent=5 // pred_region
      %s185 = ssub.s32 %s11, 1
      // Predicated region
      $region13: #{bezier_matcher_cost.1} parent=11 // pred_check
        %p186 = pneg %p96
      $region14: #{bezier_matcher_cost.1} parent=11 // pred_check_branch
        %188 = sbr.rel (%p186) target = $region16
      $region15: #{bezier_matcher_cost.1} parent=11 // pred_region
        _
      $region16: #{bezier_matcher_cost.1} parent=11 // pred_fallthru
        _
      // Predicated region
      $region17: #{bezier_matcher_cost.1} parent=11 // pred_check
        %p189 = pneg %p122
      $region18: #{bezier_matcher_cost.1} parent=11 // pred_check_branch
        %191 = sbr.rel (%p189) target = $region20
      $region19: #{bezier_matcher_cost.1} parent=11 // pred_region
        %s192 = smul.u32 16, %s21
        %p193 = scmp.lt.s32.totalorder %s192, 15
        %s194 = scalar_select %p193, %s192, 15
        %s195 = smul.addr %s194, 2
        %s196 = smul.addr %s195, 8
        %s197 = scalar_lea.vmem %s3, %s196
        %s198 = smul.u32 16, %s21
      $region20: #{bezier_matcher_cost.1} parent=11 // pred_fallthru
        _
      // Predicated region
      $region21: #{bezier_matcher_cost.1} parent=11 // pred_check
        %p199 = pneg %p143
      $region22: #{bezier_matcher_cost.1} parent=11 // pred_check_branch
        %201 = sbr.rel (%p199) target = $region24
      $region23: #{bezier_matcher_cost.1} parent=11 // pred_region
        _
      $region24: #{bezier_matcher_cost.1} parent=11 // pred_fallthru
        _
    $region12: #{bezier_matcher_cost.1} parent=5 // pred_fallthru
      _
    %p202 = scmp.lt.s32.totalorder %s11, 2
    // Predicated region
    $region25: #{bezier_matcher_cost.1} parent=5 // pred_check
      %p203 = pneg %p202
    $region26: #{bezier_matcher_cost.1} parent=5 // pred_check_branch
      %205 = sbr.rel (%p203) target = $region28
    $region27: #{bezier_matcher_cost.1} parent=5 // pred_region
      // Predicated region
      $region29: #{bezier_matcher_cost.1} parent=27 // pred_check
        %p206 = pneg %p43
      $region30: #{bezier_matcher_cost.1} parent=27 // pred_check_branch
        %208 = sbr.rel (%p206) target = $region32
      $region31: #{bezier_matcher_cost.1} parent=27 // pred_region
        %p209 = scmp.lt.s32.totalorder %s18, 1
        %s210 = scalar_select %p209, %s18, 1
        %s211 = smul.addr %s210, 8
        %s212 = scalar_lea.vmem %s0, %s211
      $region32: #{bezier_matcher_cost.1} parent=27 // pred_fallthru
        _
      // Predicated region
      $region33: #{bezier_matcher_cost.1} parent=27 // pred_check
        %p213 = pneg %p69
      $region34: #{bezier_matcher_cost.1} parent=27 // pred_check_branch
        %215 = sbr.rel (%p213) target = $region36
      $region35: #{bezier_matcher_cost.1} parent=27 // pred_region
        %p216 = scmp.lt.s32.totalorder %s18, 1
        %s217 = scalar_select %p216, %s18, 1
        %s218 = smul.addr %s217, 8
        %s219 = scalar_lea.vmem %s1, %s218
      $region36: #{bezier_matcher_cost.1} parent=27 // pred_fallthru
        _
    $region28: #{bezier_matcher_cost.1} parent=5 // pred_fallthru
      _
    %p220 = scmp.le.s32.totalorder 1, %s11
    %p221 = scmp.lt.s32.totalorder %s11, 3
    %p222 = pnand %p220, %p221
    %p223 = pneg %p222
    // Predicated region
    $region37: #{bezier_matcher_cost.1} parent=5 // pred_check
      _
    $region38: #{bezier_matcher_cost.1} parent=5 // pred_check_branch
      %225 = sbr.rel (%p222) target = $region40
    $region39: #{bezier_matcher_cost.1} parent=5 // pred_region
      %s226 = ssub.s32 %s11, 1
      %p227 = scmp.lt.s32.totalorder %s20, 1
      %s228 = scalar_select %p227, %s20, 1
      %s229 = smul.addr %s228, 8
      %s230 = scalar_lea.vmem %s0, %s229
      %p231 = pneg %p49
      %p232 = pneg %p46
      %p233 = scmp.lt.s32.totalorder %s20, 1
      %s234 = scalar_select %p233, %s20, 1
      %s235 = smul.addr %s234, 8
      %s236 = scalar_lea.vmem %s1, %s235
      %p237 = pneg %p75
      %p238 = pneg %p72
      %p239 = pneg %p96
      %p240 = pneg %p93
      %s241 = smul.u32 16, %s21
      %p242 = scmp.lt.s32.totalorder %s241, 15
      %s243 = scalar_select %p242, %s241, 15
      %s244 = smul.addr %s243, 2
      %s245 = smul.addr %s244, 8
      %s246 = scalar_lea.vmem %s3, %s245
      %p247 = pneg %p122
      %p248 = pneg %p119
      %p249 = pneg %p143
      %p250 = pneg %p140
      %p251 = pneg %p171
      %p252 = pneg %p168
      %p253 = scmp.lt.s32.totalorder %s20, 1
      %s254 = scalar_select %p253, %s20, 1
      %p255 = scmp.lt.s32.totalorder %s21, 0
      %s256 = scalar_select %p255, %s21, 0
      %s257 = sadd.s32 %s256, %s254
      %s258 = smul.addr %s257, 8
      %s259 = scalar_lea.vmem %s5, %s258
      %p260 = scmp.lt.s32.totalorder %s20, 1
      %s261 = scalar_select %p260, %s20, 1
      %s262 = smul.addr %s261, 8
      %s263 = scalar_lea.vmem %s0, %s262
      %p264 = scmp.lt.s32.totalorder %s20, 1
      %s265 = scalar_select %p264, %s20, 1
      %s266 = smul.addr %s265, 8
      %s267 = scalar_lea.vmem %s1, %s266
      %s268 = smul.u32 16, %s21
      %p269 = scmp.lt.s32.totalorder %s268, 15
      %s270 = scalar_select %p269, %s268, 15
      %s271 = smul.addr %s270, 2
      %s272 = smul.addr %s271, 8
      %s273 = scalar_lea.vmem %s3, %s272
      %s274 = smul.u32 16, %s21
      %p275 = scmp.lt.s32.totalorder %s20, 1
      %s276 = scalar_select %p275, %s20, 1
      %p277 = scmp.lt.s32.totalorder %s21, 0
      %s278 = scalar_select %p277, %s21, 0
      %s279 = sadd.s32 %s278, %s276
      %s280 = smul.addr %s279, 8
      %s281 = scalar_lea.vmem %s5, %s280
      %v282 = vld [vmem:[%s267] sm:$0xff]
      %v283 = vld [vmem:[%s2] sm:$0xff]
      %v284 = vld [vmem:[%s2 + $0x8] sm:$0xff]
      %vm285 = vcmask 64512
      %v287 = vsel %vm285, %v282, 0
      %289 = vmatprep.subr.mxu0 %v284
      %290 = vmatpush1.msra.mxu0 %v283
      %291 = vmatprep.subr.mxu0 0.0
      %292 = vmatpush1.msra.mxu0 0.0
      %293 = vmatprep.subr.mxu0 0.0
      %294 = vmatpush1.msra.mxu0 0.0
      %295 = vmatprep.subr.mxu0 0.0
      %296 = vmatpush1.msra.mxu0 0.0
      %297 = vmatprep.subr.mxu0 0.0
      %298 = vmatpush1.msra.mxu0 0.0
      %299 = vmatprep.subr.mxu0 0.0
      %300 = vmatpush1.msra.mxu0 0.0
      %301 = vmatprep.subr.mxu0 0.0
      %302 = vmatpush1.msra.mxu0 0.0
      %303 = vmatprep.subr.mxu0 0.0
      %304 = vmatpush1.msra.mxu0 0.0
      %305 = vmatprep.subr.mxu0 0.0
      %306 = vmatpush1.msra.mxu0 0.0
      %307 = vmatprep.subr.mxu0 0.0
      %308 = vmatpush1.msra.mxu0 0.0
      %309 = vmatprep.subr.mxu0 0.0
      %310 = vmatpush1.msra.mxu0 0.0
      %311 = vmatprep.subr.mxu0 0.0
      %312 = vmatpush1.msra.mxu0 0.0
      %313 = vmatprep.subr.mxu0 0.0
      %314 = vmatpush1.msra.mxu0 0.0
      %315 = vmatprep.subr.mxu0 0.0
      %316 = vmatpush1.msra.mxu0 0.0
      %317 = vmatprep.subr.mxu0 0.0
      %318 = vmatpush1.msra.mxu0 0.0
      %319 = vmatprep.subr.mxu0 0.0
      %320 = vmatpush1.msra.mxu0 0.0
      %321 = vmatprep.subr.mxu0 0.0
      %322 = vmatpush1.msra.mxu0 0.0
      %323 = vmatprep.subr.mxu0 0.0
      %324 = vmatpush1.msra.mxu0 0.0
      %325 = vmatprep.subr.mxu0 0.0
      %326 = vmatpush1.msra.mxu0 0.0
      %327 = vmatprep.subr.mxu0 0.0
      %328 = vmatpush1.msra.mxu0 0.0
      %329 = vmatprep.subr.mxu0 0.0
      %330 = vmatpush1.msra.mxu0 0.0
      %331 = vmatprep.subr.mxu0 0.0
      %332 = vmatpush1.msra.mxu0 0.0
      %333 = vmatprep.subr.mxu0 0.0
      %334 = vmatpush1.msra.mxu0 0.0
      %335 = vmatprep.subr.mxu0 0.0
      %336 = vmatpush1.msra.mxu0 0.0
      %337 = vmatprep.subr.mxu0 0.0
      %338 = vmatpush1.msra.mxu0 0.0
      %339 = vmatprep.subr.mxu0 0.0
      %340 = vmatpush1.msra.mxu0 0.0
      %341 = vmatprep.subr.mxu0 0.0
      %342 = vmatpush1.msra.mxu0 0.0
      %343 = vmatprep.subr.mxu0 0.0
      %344 = vmatpush1.msra.mxu0 0.0
      %345 = vmatprep.subr.mxu0 0.0
      %346 = vmatpush1.msra.mxu0 0.0
      %347 = vmatprep.subr.mxu0 0.0
      %348 = vmatpush1.msra.mxu0 0.0
      %349 = vmatprep.subr.mxu0 0.0
      %350 = vmatpush1.msra.mxu0 0.0
      %351 = vmatprep.subr.mxu0 0.0
      %352 = vmatpush1.msra.mxu0 0.0
      %353 = vmatprep.mubr.f32.mxu0 0.0
      %354 = vmatmul.mubr.f32.gmra.mrb[0].mxu0 %v287
      %v355 = vpop.f32.mrb[0].mxu0
      %v356 = vadd.f32 0.0, %v355
      %v357 = vpop.f32.mrb[0].mxu0
      %v358 = vadd.f32 0.0, %v357
      %359 = vdwg.mxu0
      %360 = vst [vmem:[#allocation2] sm:$0xff] %v356
      %361 = vst [vmem:[#allocation2 + $0x8] sm:$0xff] %v358
      %362 = vst [vmem:[%s281] sm:$0xff] 0.0
      %v363 = vld [vmem:[%s263] sm:$0xff]
      %v364 = vld [vmem:[%s4] sm:$0xff]
      %v365 = vld [vmem:[%s4 + $0x8] sm:$0xff]
      %v366 = vld [vmem:[%s4 + $0x10] sm:$0xff]
      %v367 = vld [vmem:[%s4 + $0x18] sm:$0xff]
      %v368 = vld [vmem:[%s4 + $0x20] sm:$0xff]
      %v369 = vld [vmem:[%s4 + $0x28] sm:$0xff]
      %v370 = vld [vmem:[%s4 + $0x30] sm:$0xff]
      %v371 = vld [vmem:[%s4 + $0x38] sm:$0xff]
      %v372 = vld [vmem:[%s4 + $0x40] sm:$0xff]
      %v373 = vld [vmem:[%s4 + $0x48] sm:$0xff]
      %v374 = vld [vmem:[%s4 + $0x50] sm:$0xff]
      %v375 = vld [vmem:[%s4 + $0x58] sm:$0xff]
      %v376 = vld [vmem:[%s4 + $0x60] sm:$0xff]
      %v377 = vld [vmem:[%s4 + $0x68] sm:$0xff]
      %v378 = vld [vmem:[%s4 + $0x70] sm:$0xff]
      %v379 = vld [vmem:[%s4 + $0x78] sm:$0xff]
      %v380 = vld [vmem:[%s4 + $0x80] sm:$0xff]
      %v381 = vld [vmem:[%s4 + $0x88] sm:$0xff]
      %v382 = vld [vmem:[%s4 + $0x90] sm:$0xff]
      %v383 = vld [vmem:[%s4 + $0x98] sm:$0xff]
      %v384 = vld [vmem:[%s4 + $0xa0] sm:$0xff]
      %v385 = vld [vmem:[%s4 + $0xa8] sm:$0xff]
      %v386 = vld [vmem:[%s4 + $0xb0] sm:$0xff]
      %v387 = vld [vmem:[%s4 + $0xb8] sm:$0xff]
      %v388 = vld [vmem:[%s4 + $0xc0] sm:$0xff]
      %v389 = vld [vmem:[%s4 + $0xc8] sm:$0xff]
      %v390 = vld [vmem:[%s4 + $0xd0] sm:$0xff]
      %v391 = vld [vmem:[%s4 + $0xd8] sm:$0xff]
      %v392 = vld [vmem:[%s4 + $0xe0] sm:$0xff]
      %v393 = vld [vmem:[%s4 + $0xe8] sm:$0xff]
      %v394 = vld [vmem:[%s4 + $0xf0] sm:$0xff]
      %v395 = vld [vmem:[%s4 + $0xf8] sm:$0xff]
      %v396 = vld [vmem:[%s273] ss:$8 sm:$0x3]
      %v397 = vld [vmem:[#allocation2] sm:$0xff]
      %v398 = vld [vmem:[#allocation2 + $0x8] sm:$0xff]
      %v400 = vlaneseq
      %v401 = vshrl.u32 %v400, 7
      %v402 = vsub.s32 0, %v401
      %v403 = vrot.slane %v396, %v402
      %v404 = vlaneseq
      %v405 = vshrl.u32 %v404, 7
      %v406 = vsub.s32 1, %v405
      %v407 = vrot.slane %v396, %v406
      %v410 = vsub.f32 %v397, %v403
      %v411 = vsub.f32 %v398, %v407
      %v412 = vand.u32 2147483647, %v410
      %v413 = vand.u32 2147483647, %v411
      %414 = vmatprep.subr.mxu0 0.0
      %415 = vmatpush1.msra.mxu0 %v364
      %416 = vmatprep.subr.mxu0 0.0
      %417 = vmatpush1.msra.mxu0 %v365
      %418 = vmatprep.subr.mxu0 0.0
      %419 = vmatpush1.msra.mxu0 %v366
      %420 = vmatprep.subr.mxu0 0.0
      %421 = vmatpush1.msra.mxu0 %v367
      %422 = vmatprep.subr.mxu0 0.0
      %423 = vmatpush1.msra.mxu0 %v368
      %424 = vmatprep.subr.mxu0 0.0
      %425 = vmatpush1.msra.mxu0 %v369
      %426 = vmatprep.subr.mxu0 0.0
      %427 = vmatpush1.msra.mxu0 %v370
      %428 = vmatprep.subr.mxu0 0.0
      %429 = vmatpush1.msra.mxu0 %v371
      %430 = vmatprep.subr.mxu0 0.0
      %431 = vmatpush1.msra.mxu0 %v372
      %432 = vmatprep.subr.mxu0 0.0
      %433 = vmatpush1.msra.mxu0 %v373
      %434 = vmatprep.subr.mxu0 0.0
      %435 = vmatpush1.msra.mxu0 %v374
      %436 = vmatprep.subr.mxu0 0.0
      %437 = vmatpush1.msra.mxu0 %v375
      %438 = vmatprep.subr.mxu0 0.0
      %439 = vmatpush1.msra.mxu0 %v376
      %440 = vmatprep.subr.mxu0 0.0
      %441 = vmatpush1.msra.mxu0 %v377
      %442 = vmatprep.subr.mxu0 0.0
      %443 = vmatpush1.msra.mxu0 %v378
      %444 = vmatprep.subr.mxu0 0.0
      %445 = vmatpush1.msra.mxu0 %v379
      %446 = vmatprep.subr.mxu0 0.0
      %447 = vmatpush1.msra.mxu0 %v380
      %448 = vmatprep.subr.mxu0 0.0
      %449 = vmatpush1.msra.mxu0 %v381
      %450 = vmatprep.subr.mxu0 0.0
      %451 = vmatpush1.msra.mxu0 %v382
      %452 = vmatprep.subr.mxu0 0.0
      %453 = vmatpush1.msra.mxu0 %v383
      %454 = vmatprep.subr.mxu0 0.0
      %455 = vmatpush1.msra.mxu0 %v384
      %456 = vmatprep.subr.mxu0 0.0
      %457 = vmatpush1.msra.mxu0 %v385
      %458 = vmatprep.subr.mxu0 0.0
      %459 = vmatpush1.msra.mxu0 %v386
      %460 = vmatprep.subr.mxu0 0.0
      %461 = vmatpush1.msra.mxu0 %v387
      %462 = vmatprep.subr.mxu0 0.0
      %463 = vmatpush1.msra.mxu0 %v388
      %464 = vmatprep.subr.mxu0 0.0
      %465 = vmatpush1.msra.mxu0 %v389
      %466 = vmatprep.subr.mxu0 0.0
      %467 = vmatpush1.msra.mxu0 %v390
      %468 = vmatprep.subr.mxu0 0.0
      %469 = vmatpush1.msra.mxu0 %v391
      %470 = vmatprep.subr.mxu0 0.0
      %471 = vmatpush1.msra.mxu0 %v392
      %472 = vmatprep.subr.mxu0 0.0
      %473 = vmatpush1.msra.mxu0 %v393
      %474 = vmatprep.subr.mxu0 0.0
      %475 = vmatpush1.msra.mxu0 %v394
      %476 = vmatprep.subr.mxu0 0.0
      %477 = vmatpush1.msra.mxu0 %v395
      %478 = vmatprep.mubr.f32.mxu0 %v413
      %479 = vmatmul.mubr.f32.gmra.mrb[0].mxu0 %v412
      %v480 = vpop.f32.mrb[0].mxu0
      %v481 = vadd.f32 0.0, %v480
      %v482 = vpop.f32.mrb[0].mxu0
      %483 = vdwg.mxu0
      %v484 = vadd.f32 %v363, %v481
      %vm485 = vcmask 7168
      %486 = vst.msk [vmem:[%s281] sm:$0xff] %vm485, %v484
      %s487 = scalar_lea.vmem %s273, 1
      %v488 = vld [vmem:[%s487] ss:$8 sm:$0x3]
      %v489 = vld [vmem:[#allocation2] sm:$0xff]
      %v490 = vld [vmem:[#allocation2 + $0x8] sm:$0xff]
      %v492 = vlaneseq
      %v493 = vshrl.u32 %v492, 7
      %v494 = vsub.s32 0, %v493
      %v495 = vrot.slane %v488, %v494
      %v496 = vlaneseq
      %v497 = vshrl.u32 %v496, 7
      %v498 = vsub.s32 1, %v497
      %v499 = vrot.slane %v488, %v498
      %v502 = vsub.f32 %v489, %v495
      %v503 = vsub.f32 %v490, %v499
      %v504 = vand.u32 2147483647, %v502
      %v505 = vand.u32 2147483647, %v503
      %506 = vmatprep.subr.mxu0 0.0
      %507 = vmatpush1.msra.mxu0 %v364
      %508 = vmatprep.subr.mxu0 0.0
      %509 = vmatpush1.msra.mxu0 %v365
      %510 = vmatprep.subr.mxu0 0.0
      %511 = vmatpush1.msra.mxu0 %v366
      %512 = vmatprep.subr.mxu0 0.0
      %513 = vmatpush1.msra.mxu0 %v367
      %514 = vmatprep.subr.mxu0 0.0
      %515 = vmatpush1.msra.mxu0 %v368
      %516 = vmatprep.subr.mxu0 0.0
      %517 = vmatpush1.msra.mxu0 %v369
      %518 = vmatprep.subr.mxu0 0.0
      %519 = vmatpush1.msra.mxu0 %v370
      %520 = vmatprep.subr.mxu0 0.0
      %521 = vmatpush1.msra.mxu0 %v371
      %522 = vmatprep.subr.mxu0 0.0
      %523 = vmatpush1.msra.mxu0 %v372
      %524 = vmatprep.subr.mxu0 0.0
      %525 = vmatpush1.msra.mxu0 %v373
      %526 = vmatprep.subr.mxu0 0.0
      %527 = vmatpush1.msra.mxu0 %v374
      %528 = vmatprep.subr.mxu0 0.0
      %529 = vmatpush1.msra.mxu0 %v375
      %530 = vmatprep.subr.mxu0 0.0
      %531 = vmatpush1.msra.mxu0 %v376
      %532 = vmatprep.subr.mxu0 0.0
      %533 = vmatpush1.msra.mxu0 %v377
      %534 = vmatprep.subr.mxu0 0.0
      %535 = vmatpush1.msra.mxu0 %v378
      %536 = vmatprep.subr.mxu0 0.0
      %537 = vmatpush1.msra.mxu0 %v379
      %538 = vmatprep.subr.mxu0 0.0
      %539 = vmatpush1.msra.mxu0 %v380
      %540 = vmatprep.subr.mxu0 0.0
      %541 = vmatpush1.msra.mxu0 %v381
      %542 = vmatprep.subr.mxu0 0.0
      %543 = vmatpush1.msra.mxu0 %v382
      %544 = vmatprep.subr.mxu0 0.0
      %545 = vmatpush1.msra.mxu0 %v383
      %546 = vmatprep.subr.mxu0 0.0
      %547 = vmatpush1.msra.mxu0 %v384
      %548 = vmatprep.subr.mxu0 0.0
      %549 = vmatpush1.msra.mxu0 %v385
      %550 = vmatprep.subr.mxu0 0.0
      %551 = vmatpush1.msra.mxu0 %v386
      %552 = vmatprep.subr.mxu0 0.0
      %553 = vmatpush1.msra.mxu0 %v387
      %554 = vmatprep.subr.mxu0 0.0
      %555 = vmatpush1.msra.mxu0 %v388
      %556 = vmatprep.subr.mxu0 0.0
      %557 = vmatpush1.msra.mxu0 %v389
      %558 = vmatprep.subr.mxu0 0.0
      %559 = vmatpush1.msra.mxu0 %v390
      %560 = vmatprep.subr.mxu0 0.0
      %561 = vmatpush1.msra.mxu0 %v391
      %562 = vmatprep.subr.mxu0 0.0
      %563 = vmatpush1.msra.mxu0 %v392
      %564 = vmatprep.subr.mxu0 0.0
      %565 = vmatpush1.msra.mxu0 %v393
      %566 = vmatprep.subr.mxu0 0.0
      %567 = vmatpush1.msra.mxu0 %v394
      %568 = vmatprep.subr.mxu0 0.0
      %569 = vmatpush1.msra.mxu0 %v395
      %570 = vmatprep.mubr.f32.mxu0 %v505
      %571 = vmatmul.mubr.f32.gmra.mrb[0].mxu0 %v504
      %v572 = vpop.f32.mrb[0].mxu0
      %v573 = vadd.f32 0.0, %v572
      %v574 = vpop.f32.mrb[0].mxu0
      %575 = vdwg.mxu0
      %v576 = vadd.f32 %v363, %v573
      %578 = vrot.lane.b32.xlu0 %v576, 1
      %v579 = vpop.permute.xlu0 %578
      %vm581 = vcmask 15368
      %582 = vst.msk [vmem:[%s281] sm:$0xff] %vm581, %v579
      %s583 = scalar_lea.vmem %s273, 2
      %v584 = vld [vmem:[%s583] ss:$8 sm:$0x3]
      %v585 = vld [vmem:[#allocation2] sm:$0xff]
      %v586 = vld [vmem:[#allocation2 + $0x8] sm:$0xff]
      %v588 = vlaneseq
      %v589 = vshrl.u32 %v588, 7
      %v590 = vsub.s32 0, %v589
      %v591 = vrot.slane %v584, %v590
      %v592 = vlaneseq
      %v593 = vshrl.u32 %v592, 7
      %v594 = vsub.s32 1, %v593
      %v595 = vrot.slane %v584, %v594
      %v598 = vsub.f32 %v585, %v591
      %v599 = vsub.f32 %v586, %v595
      %v600 = vand.u32 2147483647, %v598
      %v601 = vand.u32 2147483647, %v599
      %602 = vmatprep.subr.mxu0 0.0
      %603 = vmatpush1.msra.mxu0 %v364
      %604 = vmatprep.subr.mxu0 0.0
      %605 = vmatpush1.msra.mxu0 %v365
      %606 = vmatprep.subr.mxu0 0.0
      %607 = vmatpush1.msra.mxu0 %v366
      %608 = vmatprep.subr.mxu0 0.0
      %609 = vmatpush1.msra.mxu0 %v367
      %610 = vmatprep.subr.mxu0 0.0
      %611 = vmatpush1.msra.mxu0 %v368
      %612 = vmatprep.subr.mxu0 0.0
      %613 = vmatpush1.msra.mxu0 %v369
      %614 = vmatprep.subr.mxu0 0.0
      %615 = vmatpush1.msra.mxu0 %v370
      %616 = vmatprep.subr.mxu0 0.0
      %617 = vmatpush1.msra.mxu0 %v371
      %618 = vmatprep.subr.mxu0 0.0
      %619 = vmatpush1.msra.mxu0 %v372
      %620 = vmatprep.subr.mxu0 0.0
      %621 = vmatpush1.msra.mxu0 %v373
      %622 = vmatprep.subr.mxu0 0.0
      %623 = vmatpush1.msra.mxu0 %v374
      %624 = vmatprep.subr.mxu0 0.0
      %625 = vmatpush1.msra.mxu0 %v375
      %626 = vmatprep.subr.mxu0 0.0
      %627 = vmatpush1.msra.mxu0 %v376
      %628 = vmatprep.subr.mxu0 0.0
      %629 = vmatpush1.msra.mxu0 %v377
      %630 = vmatprep.subr.mxu0 0.0
      %631 = vmatpush1.msra.mxu0 %v378
      %632 = vmatprep.subr.mxu0 0.0
      %633 = vmatpush1.msra.mxu0 %v379
      %634 = vmatprep.subr.mxu0 0.0
      %635 = vmatpush1.msra.mxu0 %v380
      %636 = vmatprep.subr.mxu0 0.0
      %637 = vmatpush1.msra.mxu0 %v381
      %638 = vmatprep.subr.mxu0 0.0
      %639 = vmatpush1.msra.mxu0 %v382
      %640 = vmatprep.subr.mxu0 0.0
      %641 = vmatpush1.msra.mxu0 %v383
      %642 = vmatprep.subr.mxu0 0.0
      %643 = vmatpush1.msra.mxu0 %v384
      %644 = vmatprep.subr.mxu0 0.0
      %645 = vmatpush1.msra.mxu0 %v385
      %646 = vmatprep.subr.mxu0 0.0
      %647 = vmatpush1.msra.mxu0 %v386
      %648 = vmatprep.subr.mxu0 0.0
      %649 = vmatpush1.msra.mxu0 %v387
      %650 = vmatprep.subr.mxu0 0.0
      %651 = vmatpush1.msra.mxu0 %v388
      %652 = vmatprep.subr.mxu0 0.0
      %653 = vmatpush1.msra.mxu0 %v389
      %654 = vmatprep.subr.mxu0 0.0
      %655 = vmatpush1.msra.mxu0 %v390
      %656 = vmatprep.subr.mxu0 0.0
      %657 = vmatpush1.msra.mxu0 %v391
      %658 = vmatprep.subr.mxu0 0.0
      %659 = vmatpush1.msra.mxu0 %v392
      %660 = vmatprep.subr.mxu0 0.0
      %661 = vmatpush1.msra.mxu0 %v393
      %662 = vmatprep.subr.mxu0 0.0
      %663 = vmatpush1.msra.mxu0 %v394
      %664 = vmatprep.subr.mxu0 0.0
      %665 = vmatpush1.msra.mxu0 %v395
      %666 = vmatprep.mubr.f32.mxu0 %v601
      %667 = vmatmul.mubr.f32.gmra.mrb[0].mxu0 %v600
      %v668 = vpop.f32.mrb[0].mxu0
      %v669 = vadd.f32 0.0, %v668
      %v670 = vpop.f32.mrb[0].mxu0
      %671 = vdwg.mxu0
      %v672 = vadd.f32 %v363, %v669
      %674 = vrot.lane.b32.xlu0 %v672, 2
      %v675 = vpop.permute.xlu0 %674
      %vm677 = vcmask 23568
      %678 = vst.msk [vmem:[%s281] sm:$0xff] %vm677, %v675
      %s679 = scalar_lea.vmem %s273, 3
      %v680 = vld [vmem:[%s679] ss:$8 sm:$0x3]
      %v681 = vld [vmem:[#allocation2] sm:$0xff]
      %v682 = vld [vmem:[#allocation2 + $0x8] sm:$0xff]
      %v684 = vlaneseq
      %v685 = vshrl.u32 %v684, 7
      %v686 = vsub.s32 0, %v685
      %v687 = vrot.slane %v680, %v686
      %v688 = vlaneseq
      %v689 = vshrl.u32 %v688, 7
      %v690 = vsub.s32 1, %v689
      %v691 = vrot.slane %v680, %v690
      %v694 = vsub.f32 %v681, %v687
      %v695 = vsub.f32 %v682, %v691
      %v696 = vand.u32 2147483647, %v694
      %v697 = vand.u32 2147483647, %v695
      %698 = vmatprep.subr.mxu0 0.0
      %699 = vmatpush1.msra.mxu0 %v364
      %700 = vmatprep.subr.mxu0 0.0
      %701 = vmatpush1.msra.mxu0 %v365
      %702 = vmatprep.subr.mxu0 0.0
      %703 = vmatpush1.msra.mxu0 %v366
      %704 = vmatprep.subr.mxu0 0.0
      %705 = vmatpush1.msra.mxu0 %v367
      %706 = vmatprep.subr.mxu0 0.0
      %707 = vmatpush1.msra.mxu0 %v368
      %708 = vmatprep.subr.mxu0 0.0
      %709 = vmatpush1.msra.mxu0 %v369
      %710 = vmatprep.subr.mxu0 0.0
      %711 = vmatpush1.msra.mxu0 %v370
      %712 = vmatprep.subr.mxu0 0.0
      %713 = vmatpush1.msra.mxu0 %v371
      %714 = vmatprep.subr.mxu0 0.0
      %715 = vmatpush1.msra.mxu0 %v372
      %716 = vmatprep.subr.mxu0 0.0
      %717 = vmatpush1.msra.mxu0 %v373
      %718 = vmatprep.subr.mxu0 0.0
      %719 = vmatpush1.msra.mxu0 %v374
      %720 = vmatprep.subr.mxu0 0.0
      %721 = vmatpush1.msra.mxu0 %v375
      %722 = vmatprep.subr.mxu0 0.0
      %723 = vmatpush1.msra.mxu0 %v376
      %724 = vmatprep.subr.mxu0 0.0
      %725 = vmatpush1.msra.mxu0 %v377
      %726 = vmatprep.subr.mxu0 0.0
      %727 = vmatpush1.msra.mxu0 %v378
      %728 = vmatprep.subr.mxu0 0.0
      %729 = vmatpush1.msra.mxu0 %v379
      %730 = vmatprep.subr.mxu0 0.0
      %731 = vmatpush1.msra.mxu0 %v380
      %732 = vmatprep.subr.mxu0 0.0
      %733 = vmatpush1.msra.mxu0 %v381
      %734 = vmatprep.subr.mxu0 0.0
      %735 = vmatpush1.msra.mxu0 %v382
      %736 = vmatprep.subr.mxu0 0.0
      %737 = vmatpush1.msra.mxu0 %v383
      %738 = vmatprep.subr.mxu0 0.0
      %739 = vmatpush1.msra.mxu0 %v384
      %740 = vmatprep.subr.mxu0 0.0
      %741 = vmatpush1.msra.mxu0 %v385
      %742 = vmatprep.subr.mxu0 0.0
      %743 = vmatpush1.msra.mxu0 %v386
      %744 = vmatprep.subr.mxu0 0.0
      %745 = vmatpush1.msra.mxu0 %v387
      %746 = vmatprep.subr.mxu0 0.0
      %747 = vmatpush1.msra.mxu0 %v388
      %748 = vmatprep.subr.mxu0 0.0
      %749 = vmatpush1.msra.mxu0 %v389
      %750 = vmatprep.subr.mxu0 0.0
      %751 = vmatpush1.msra.mxu0 %v390
      %752 = vmatprep.subr.mxu0 0.0
      %753 = vmatpush1.msra.mxu0 %v391
      %754 = vmatprep.subr.mxu0 0.0
      %755 = vmatpush1.msra.mxu0 %v392
      %756 = vmatprep.subr.mxu0 0.0
      %757 = vmatpush1.msra.mxu0 %v393
      %758 = vmatprep.subr.mxu0 0.0
      %759 = vmatpush1.msra.mxu0 %v394
      %760 = vmatprep.subr.mxu0 0.0
      %761 = vmatpush1.msra.mxu0 %v395
      %762 = vmatprep.mubr.f32.mxu0 %v697
      %763 = vmatmul.mubr.f32.gmra.mrb[0].mxu0 %v696
      %v764 = vpop.f32.mrb[0].mxu0
      %v765 = vadd.f32 0.0, %v764
      %v766 = vpop.f32.mrb[0].mxu0
      %767 = vdwg.mxu0
      %v768 = vadd.f32 %v363, %v765
      %770 = vrot.lane.b32.xlu0 %v768, 3
      %v771 = vpop.permute.xlu0 %770
      %vm773 = vcmask 31768
      %774 = vst.msk [vmem:[%s281] sm:$0xff] %vm773, %v771
      %s775 = scalar_lea.vmem %s273, 4
      %v776 = vld [vmem:[%s775] ss:$8 sm:$0x3]
      %v777 = vld [vmem:[#allocation2] sm:$0xff]
      %v778 = vld [vmem:[#allocation2 + $0x8] sm:$0xff]
      %v780 = vlaneseq
      %v781 = vshrl.u32 %v780, 7
      %v782 = vsub.s32 0, %v781
      %v783 = vrot.slane %v776, %v782
      %v784 = vlaneseq
      %v785 = vshrl.u32 %v784, 7
      %v786 = vsub.s32 1, %v785
      %v787 = vrot.slane %v776, %v786
      %v790 = vsub.f32 %v777, %v783
      %v791 = vsub.f32 %v778, %v787
      %v792 = vand.u32 2147483647, %v790
      %v793 = vand.u32 2147483647, %v791
      %794 = vmatprep.subr.mxu0 0.0
      %795 = vmatpush1.msra.mxu0 %v364
      %796 = vmatprep.subr.mxu0 0.0
      %797 = vmatpush1.msra.mxu0 %v365
      %798 = vmatprep.subr.mxu0 0.0
      %799 = vmatpush1.msra.mxu0 %v366
      %800 = vmatprep.subr.mxu0 0.0
      %801 = vmatpush1.msra.mxu0 %v367
      %802 = vmatprep.subr.mxu0 0.0
      %803 = vmatpush1.msra.mxu0 %v368
      %804 = vmatprep.subr.mxu0 0.0
      %805 = vmatpush1.msra.mxu0 %v369
      %806 = vmatprep.subr.mxu0 0.0
      %807 = vmatpush1.msra.mxu0 %v370
      %808 = vmatprep.subr.mxu0 0.0
      %809 = vmatpush1.msra.mxu0 %v371
      %810 = vmatprep.subr.mxu0 0.0
      %811 = vmatpush1.msra.mxu0 %v372
      %812 = vmatprep.subr.mxu0 0.0
      %813 = vmatpush1.msra.mxu0 %v373
      %814 = vmatprep.subr.mxu0 0.0
      %815 = vmatpush1.msra.mxu0 %v374
      %816 = vmatprep.subr.mxu0 0.0
      %817 = vmatpush1.msra.mxu0 %v375
      %818 = vmatprep.subr.mxu0 0.0
      %819 = vmatpush1.msra.mxu0 %v376
      %820 = vmatprep.subr.mxu0 0.0
      %821 = vmatpush1.msra.mxu0 %v377
      %822 = vmatprep.subr.mxu0 0.0
      %823 = vmatpush1.msra.mxu0 %v378
      %824 = vmatprep.subr.mxu0 0.0
      %825 = vmatpush1.msra.mxu0 %v379
      %826 = vmatprep.subr.mxu0 0.0
      %827 = vmatpush1.msra.mxu0 %v380
      %828 = vmatprep.subr.mxu0 0.0
      %829 = vmatpush1.msra.mxu0 %v381
      %830 = vmatprep.subr.mxu0 0.0
      %831 = vmatpush1.msra.mxu0 %v382
      %832 = vmatprep.subr.mxu0 0.0
      %833 = vmatpush1.msra.mxu0 %v383
      %834 = vmatprep.subr.mxu0 0.0
      %835 = vmatpush1.msra.mxu0 %v384
      %836 = vmatprep.subr.mxu0 0.0
      %837 = vmatpush1.msra.mxu0 %v385
      %838 = vmatprep.subr.mxu0 0.0
      %839 = vmatpush1.msra.mxu0 %v386
      %840 = vmatprep.subr.mxu0 0.0
      %841 = vmatpush1.msra.mxu0 %v387
      %842 = vmatprep.subr.mxu0 0.0
      %843 = vmatpush1.msra.mxu0 %v388
      %844 = vmatprep.subr.mxu0 0.0
      %845 = vmatpush1.msra.mxu0 %v389
      %846 = vmatprep.subr.mxu0 0.0
      %847 = vmatpush1.msra.mxu0 %v390
      %848 = vmatprep.subr.mxu0 0.0
      %849 = vmatpush1.msra.mxu0 %v391
      %850 = vmatprep.subr.mxu0 0.0
      %851 = vmatpush1.msra.mxu0 %v392
      %852 = vmatprep.subr.mxu0 0.0
      %853 = vmatpush1.msra.mxu0 %v393
      %854 = vmatprep.subr.mxu0 0.0
      %855 = vmatpush1.msra.mxu0 %v394
      %856 = vmatprep.subr.mxu0 0.0
      %857 = vmatpush1.msra.mxu0 %v395
      %858 = vmatprep.mubr.f32.mxu0 %v793
      %859 = vmatmul.mubr.f32.gmra.mrb[0].mxu0 %v792
      %v860 = vpop.f32.mrb[0].mxu0
      %v861 = vadd.f32 0.0, %v860
      %v862 = vpop.f32.mrb[0].mxu0
      %863 = vdwg.mxu0
      %v864 = vadd.f32 %v363, %v861
      %866 = vrot.lane.b32.xlu0 %v864, 4
      %v867 = vpop.permute.xlu0 %866
      %vm869 = vcmask 39968
      %870 = vst.msk [vmem:[%s281] sm:$0xff] %vm869, %v867
      %p871 = scmp.lt.s32.totalorder %s20, 1
      %s872 = scalar_select %p871, %s20, 1
      %p873 = scmp.lt.s32.totalorder %s21, 0
      %s874 = scalar_select %p873, %s21, 0
      %s875 = sadd.s32 %s874, %s872
      %s876 = smul.addr %s875, 8
      %s877 = scalar_lea.vmem %s5, %s876
      // Predicated region
      $region41: #{bezier_matcher_cost.1} parent=39 // pred_check
        %p878 = pneg %p168
      $region42: #{bezier_matcher_cost.1} parent=39 // pred_check_branch
        %880 = sbr.rel (%p878) target = $region44
      $region43: #{bezier_matcher_cost.1} parent=39 // pred_region
        _
      $region44: #{bezier_matcher_cost.1} parent=39 // pred_fallthru
        _
    $region40: #{bezier_matcher_cost.1} parent=5 // pred_fallthru
      _
    %p881 = scmp.le.s32.totalorder 2, %s11
    // Predicated region
    $region45: #{bezier_matcher_cost.1} parent=5 // pred_check
      %p882 = pneg %p881
    $region46: #{bezier_matcher_cost.1} parent=5 // pred_check_branch
      %884 = sbr.rel (%p882) target = $region48
    $region47: #{bezier_matcher_cost.1} parent=5 // pred_region
      %s885 = ssub.s32 %s11, 2
      // Predicated region
      $region49: #{bezier_matcher_cost.1} parent=47 // pred_check
        %p886 = pneg %p174
      $region50: #{bezier_matcher_cost.1} parent=47 // pred_check_branch
        %888 = sbr.rel (%p886) target = $region52
      $region51: #{bezier_matcher_cost.1} parent=47 // pred_region
        %p889 = scmp.lt.s32.totalorder %s22, 1
        %s890 = scalar_select %p889, %s22, 1
        %p891 = scmp.lt.s32.totalorder %s23, 0
        %s892 = scalar_select %p891, %s23, 0
        %s893 = sadd.s32 %s892, %s890
        %s894 = smul.addr %s893, 8
        %s895 = scalar_lea.vmem %s5, %s894
      $region52: #{bezier_matcher_cost.1} parent=47 // pred_fallthru
        _
    $region48: #{bezier_matcher_cost.1} parent=5 // pred_fallthru
      _
  $region6: #{bezier_matcher_cost.1} parent=0 // loop_footer
    %s15 = sadd.s32 1, %s11
  $region7: #{bezier_matcher_cost.1} parent=0 // loop_footer_branch
    %10 = sbr.rel target = $region3
  $region8: #{bezier_matcher_cost.1} parent=0 // loop_exit
    _

</llo_original>
